<compile_context>
chip_gen: v7x
topology: tpu7x:2x2x1
jax: 0.10.0
libtpu: 0.0.40
codegen_flags: <defaults>
</compile_context>

<pallas_src>
import functools

import jax
import jax.numpy as jnp
from jax.experimental import pallas as pl
from jax.experimental.pallas import tpu as pltpu


def _layernorm_kernel(x_ref, alpha_ref, bias_ref, o_ref, *, eps: float):
    x = x_ref[...].astype(jnp.float32)                      # (tm, D)
    d = x.shape[-1]
    mean = jnp.mean(x, axis=-1, keepdims=True)              # (tm, 1)
    diff = x - mean
    if d > 1:
        # torch.std is unbiased (Bessel correction, ddof=1) by default.
        var = jnp.sum(diff * diff, axis=-1, keepdims=True) * jnp.float32(1.0 / (d - 1))
    else:
        # torch.std(ddof=1) of a single element is NaN.
        var = jnp.full_like(mean, jnp.nan)
    std = jnp.sqrt(var)
    # Exact reciprocal on the narrow (tm, 1) vector + broadcast multiplies
    # instead of a full (tm, D) VPU divide. approx=False keeps parity with the
    # reference division to within a couple of ULPs.
    inv = pl.reciprocal(std + jnp.float32(eps), approx=False)   # (tm, 1)
    alpha = alpha_ref[...].astype(jnp.float32)              # (1, D)
    bias = bias_ref[...].astype(jnp.float32)                # (1, D)
    y = (diff * inv) * alpha + bias
    o_ref[...] = y.astype(o_ref.dtype)


def _round_up(a: int, b: int) -> int:
    return ((a + b - 1) // b) * b


def _round_down(a: int, b: int) -> int:
    return (a // b) * b


def _vmem_capacity_bytes() -> int:
    # Generation-aware budget: 128 MiB on v5e/v6e, 64 MiB per TC on v7x.
    try:
        return int(pltpu.get_tpu_info().vmem_capacity_bytes)
    except Exception:
        return 64 << 20  # conservative (v7x) fallback


_TARGET_TILE_BYTES = 4 << 20   # ~4 MiB per input buffer: HBM roofline sweet spot
_MIN_TOTAL_STEPS = 16          # >= 8 steps per TensorCore on v7x megacore


def _pick_row_tile(rows: int, features: int, in_itemsize: int,
                   out_itemsize: int, sublane: int, vmem_capacity: int) -> int:
    f32 = 4
    # Resident per-row VMEM footprint:
    #   2x double-buffered input tile + 2x double-buffered output tile
    #   + ~2 (tm, D) f32 intermediates the kernel materializes (upcast, diff/y).
    per_row = features * (2 * in_itemsize + 2 * out_itemsize + 2 * f32)
    # Keep total resident footprint <= 3/4 of capacity (~48 MiB of v7x's 64 MiB).
    budget = (vmem_capacity * 3) // 4
    if per_row * sublane > budget:
        # TODO(synk): add feature-dim tiling for extremely wide feature axes.
        raise ValueError(
            f"features={features} is too wide for a single ({sublane}, D) row "
            f"tile within {budget} bytes of VMEM; feature-dim tiling is not "
            f"implemented")
    tm_vmem = _round_down(budget // per_row, sublane)

    # Cap at ~4 MiB per input buffer; bigger tiles buy ~1% bandwidth but starve
    # the pipeline of grid steps and inflate VMEM pressure.
    tm_target = max(sublane,
                    _round_down(_TARGET_TILE_BYTES // (features * in_itemsize),
                                sublane))

    tm = max(sublane, min(tm_vmem, tm_target, _round_up(rows, sublane)))

    # Keep >= _MIN_TOTAL_STEPS grid steps when the data allows it, so the
    # software pipeline always has neighbouring steps to overlap DMA with and
    # both v7x TensorCores get balanced work.
    if rows >= _MIN_TOTAL_STEPS * sublane:
        tm = min(tm, max(sublane,
                         _round_down(pl.cdiv(rows, _MIN_TOTAL_STEPS), sublane)))
    return tm


def layer_normalization(x, alpha, bias, *, eps: float = 1e-6):
    """x: (..., features). alpha, bias: (features,)."""
    orig_shape = x.shape
    features = orig_shape[-1]
    rows = 1
    for s in orig_shape[:-1]:
        rows *= s
    x2 = x.reshape(rows, features)

    in_itemsize = jnp.dtype(x.dtype).itemsize
    out_itemsize = in_itemsize
    # Sublane tiling requirement: 8 rows for 4-byte, 16 for 2-byte, 32 for 1-byte.
    sublane = max(8, 32 // in_itemsize)

    vmem_capacity = _vmem_capacity_bytes()
    tm = _pick_row_tile(rows, features, in_itemsize, out_itemsize,
                        sublane, vmem_capacity)

    # No host-side pad/slice: cdiv grid + Pallas ragged-last-block handling.
    # The tail block's out-of-range rows compute on undefined data but are
    # row-independent and their writeback is clipped to the array bounds.
    grid = (pl.cdiv(rows, tm),)

    alpha2 = alpha.reshape(1, features)
    bias2 = bias.reshape(1, features)

    # Explicit scoped-VMEM limit sized to the true resident footprint
    # (I/O double buffers + f32 intermediates + params + slack), clamped to the
    # physical capacity of this generation.
    f32 = 4
    resident_bytes = tm * features * (2 * in_itemsize + 2 * out_itemsize + 2 * f32)
    params_bytes = 2 * 2 * features * max(jnp.dtype(alpha.dtype).itemsize, f32)
    vmem_limit = max(16 << 20,
                     min(resident_bytes + params_bytes + (8 << 20), vmem_capacity))

    kernel = functools.partial(_layernorm_kernel, eps=eps)

    out = pl.pallas_call(
        kernel,
        out_shape=jax.ShapeDtypeStruct((rows, features), x.dtype),
        grid_spec=pltpu.PrefetchScalarGridSpec(
            num_scalar_prefetch=0,
            grid=grid,
            in_specs=[
                # NOTE: on v5e/v6e (128 MiB VMEM) add
                # pipeline_mode=pl.Buffered(3) here only if a trace shows gaps
                # between back-to-back input DMAs; keep 2-deep on v7x (64 MiB).
                pl.BlockSpec((tm, features), lambda i: (i, 0)),
                pl.BlockSpec((1, features), lambda i: (0, 0)),
                pl.BlockSpec((1, features), lambda i: (0, 0)),
            ],
            out_specs=pl.BlockSpec((tm, features), lambda i: (i, 0)),
        ),
        compiler_params=pltpu.CompilerParams(
            dimension_semantics=("parallel",),
            vmem_limit_bytes=int(vmem_limit),
        ),
    )(x2, alpha2, bias2)

    return out.reshape(orig_shape)


def _reference(x, alpha, bias, eps=1e-6):
    x32 = x.astype(jnp.float32)
    mean = jnp.mean(x32, axis=-1, keepdims=True)
    var = jnp.var(x32, axis=-1, keepdims=True, ddof=1)
    std = jnp.sqrt(var)
    return (alpha * (x32 - mean) / (std + eps) + bias).astype(x.dtype)


if __name__ == "__main__":
    key = jax.random.PRNGKey(0)
    batch, seq, d_model = 2, 8, 32

    x = jax.random.normal(key, (batch, seq, d_model), dtype=jnp.float32)

    # Deterministic parameter init matching nn.Parameter(torch.ones/zeros(features)).
    alpha = jnp.ones((d_model,), dtype=jnp.float32)
    bias = jnp.zeros((d_model,), dtype=jnp.float32)

    y = layer_normalization(x, alpha, bias, eps=1e-6)
    y = jax.block_until_ready(y)

    y_ref = _reference(x, alpha, bias, eps=1e-6)
    assert y.shape == x.shape
    assert jnp.allclose(y, y_ref, atol=1e-5, rtol=1e-5), "mismatch vs reference"

    # Exercise the ragged path that replaced the host-side pad + slice
    # (rows = 3*5 = 15 is not a multiple of the row tile).
    x_rag = jax.random.normal(jax.random.PRNGKey(1), (3, 5, d_model),
                              dtype=jnp.float32)
    y_rag = jax.block_until_ready(layer_normalization(x_rag, alpha, bias, eps=1e-6))
    y_rag_ref = _reference(x_rag, alpha, bias, eps=1e-6)
    assert y_rag.shape == x_rag.shape
    assert jnp.allclose(y_rag, y_rag_ref, atol=1e-5, rtol=1e-5), "ragged mismatch"

    print("KERNEL_OK")
</pallas_src>

<mosaic_0001>
module attributes {stable_mosaic.version = 11 : i64} {
  func.func @_layernorm_kernel(%arg0: i32, %arg1: memref<16x32xf32, #tpu.memory_space<vmem>>, %arg2: memref<1x32xf32, #tpu.memory_space<vmem>>, %arg3: memref<1x32xf32, #tpu.memory_space<vmem>>, %arg4: memref<16x32xf32, #tpu.memory_space<vmem>>) attributes {dimension_semantics = [#tpu.dimension_semantics<parallel>], iteration_bounds = array<i64: 1>, scalar_prefetch = 0 : i64, scratch_operands = 0 : i64, tpu.core_type = #tpu.core_type<tc>, window_params = [{transform_indices = @transform_0, window_bounds = array<i64: 16, 32>}, {pipeline_mode = #tpu.pipeline_mode<synchronous>, transform_indices = @transform_1, window_bounds = array<i64: 1, 32>}, {pipeline_mode = #tpu.pipeline_mode<synchronous>, transform_indices = @transform_2, window_bounds = array<i64: 1, 32>}, {transform_indices = @transform_3, window_bounds = array<i64: 16, 32>}]} {
    %c0 = arith.constant 0 : index
    %c0_0 = arith.constant 0 : index
    %0 = vector.load %arg1[%c0, %c0_0] : memref<16x32xf32, #tpu.memory_space<vmem>>, vector<16x32xf32>
    %cst = arith.constant dense<0.000000e+00> : vector<16xf32>
    %1 = vector.multi_reduction <add>, %0, %cst [1] : vector<16x32xf32> to vector<16xf32>
    %2 = vector.shape_cast %1 : vector<16xf32> to vector<16x1xf32>
    %cst_1 = arith.constant 3.200000e+01 : f32
    %3 = vector.broadcast %cst_1 : f32 to vector<16x1xf32>
    %4 = arith.divf %2, %3 : vector<16x1xf32>
    %5 = vector.broadcast %4 : vector<16x1xf32> to vector<16x32xf32>
    %6 = arith.subf %0, %5 : vector<16x32xf32>
    %7 = arith.mulf %6, %6 : vector<16x32xf32>
    %cst_2 = arith.constant dense<0.000000e+00> : vector<16xf32>
    %8 = vector.multi_reduction <add>, %7, %cst_2 [1] : vector<16x32xf32> to vector<16xf32>
    %9 = vector.shape_cast %8 : vector<16xf32> to vector<16x1xf32>
    %cst_3 = arith.constant 0.0322580636 : f32
    %10 = vector.broadcast %cst_3 : f32 to vector<16x1xf32>
    %11 = arith.mulf %9, %10 : vector<16x1xf32>
    %12 = math.sqrt %11 : vector<16x1xf32>
    %cst_4 = arith.constant 9.99999997E-7 : f32
    %13 = vector.broadcast %cst_4 : f32 to vector<16x1xf32>
    %14 = arith.addf %12, %13 : vector<16x1xf32>
    %15 = tpu.reciprocal %14 : vector<16x1xf32> -> vector<16x1xf32>
    %c0_5 = arith.constant 0 : index
    %c0_6 = arith.constant 0 : index
    %16 = vector.load %arg2[%c0_5, %c0_6] : memref<1x32xf32, #tpu.memory_space<vmem>>, vector<1x32xf32>
    %c0_7 = arith.constant 0 : index
    %c0_8 = arith.constant 0 : index
    %17 = vector.load %arg3[%c0_7, %c0_8] : memref<1x32xf32, #tpu.memory_space<vmem>>, vector<1x32xf32>
    %18 = vector.broadcast %15 : vector<16x1xf32> to vector<16x32xf32>
    %19 = arith.mulf %6, %18 : vector<16x32xf32>
    %20 = vector.broadcast %16 : vector<1x32xf32> to vector<16x32xf32>
    %21 = arith.mulf %19, %20 : vector<16x32xf32>
    %22 = vector.broadcast %17 : vector<1x32xf32> to vector<16x32xf32>
    %23 = arith.addf %21, %22 : vector<16x32xf32>
    %c0_9 = arith.constant 0 : index
    %c0_10 = arith.constant 0 : index
    %24 = vector.load %arg4[%c0_9, %c0_10] : memref<16x32xf32, #tpu.memory_space<vmem>>, vector<16x32xf32>
    tpu.vector_store %arg4[%c0_9, %c0_10], %23 {strides = array<i32>} : memref<16x32xf32, #tpu.memory_space<vmem>>, vector<16x32xf32>,
    return
  }
  func.func @transform_0(%arg0: i32) -> (i32, i32) {
    %c0_i32 = arith.constant 0 : i32
    %c0_i32_0 = arith.constant 0 : i32
    return %arg0, %c0_i32 : i32, i32
  }
  func.func @transform_1(%arg0: i32) -> (i32, i32) {
    %c0_i32 = arith.constant 0 : i32
    %c0_i32_0 = arith.constant 0 : i32
    %c0_i32_1 = arith.constant 0 : i32
    return %c0_i32, %c0_i32_0 : i32, i32
  }
  func.func @transform_2(%arg0: i32) -> (i32, i32) {
    %c0_i32 = arith.constant 0 : i32
    %c0_i32_0 = arith.constant 0 : i32
    %c0_i32_1 = arith.constant 0 : i32
    return %c0_i32, %c0_i32_0 : i32, i32
  }
  func.func @transform_3(%arg0: i32) -> (i32, i32) {
    %c0_i32 = arith.constant 0 : i32
    %c0_i32_0 = arith.constant 0 : i32
    return %arg0, %c0_i32 : i32, i32
  }
}

</mosaic_0001>

<llo_original>
// kernel: tpu_custom_call.1
$region0: #{tpu_custom_call.1}
  #allocation0 [shape = 'u32[]', space=smem, size = 0x4, offset = 0x4, fixed_abs, tag = 'smem constant byte address 0x4 - core index']
  #allocation1 [shape = 'u32[144,128]{1,0:T(1,128)}', space=vmem, size = 0x12000, scoped, tag = 'internal scratch']
  %s0 = inlined_call_operand.hbm [shape: f32[16,32], index: 0, kind: input, shape index: {}]
  %s1 = inlined_call_operand.vmem [shape: f32[1,32], index: 1, kind: input, shape index: {}]
  %s2 = inlined_call_operand.vmem [shape: f32[1,32], index: 2, kind: input, shape index: {}]
  %s3 = inlined_call_operand.hbm [shape: f32[16,32], index: 3, kind: output, shape index: {}]
  %s4 = sld [smem:[#allocation0]]
  $region26: #{tpu_custom_call.1} parent=0
    _
  %s6 = ssub.s32 1, %s4
  %s7 = scalar_select 0, %s6, %s4
  $region1: #{tpu_custom_call.1} parent=0
    #allocation2 [shape = 'u8[8192]{0}', space=vmem, size = 0x2000, scoped, tag = 'input window, operand 0, single buffered']
    #allocation3 [shape = 's32[1]{0}', space=sflag, size = 0x4, scoped, tag = 'scoped memory for tpu_custom_call.1']
    #allocation4 [shape = 's32[1]{0}', space=sflag, size = 0x4, scoped, tag = 'scoped memory for tpu_custom_call.1']
    #allocation5 [shape = 'u8[8192]{0}', space=vmem, size = 0x2000, scoped, tag = 'output window, operand 0, single buffered']
    %8 = vsyncpa [#allocation3], 0
    %9 = vsyncpa [#allocation4], 0
    // Predicated region
    $region2: #{tpu_custom_call.1} parent=1 // pred_check
      _
    $region3: #{tpu_custom_call.1} parent=1 // pred_check_branch
      %11 = sbr.rel (0) target = $region5
    $region4: #{tpu_custom_call.1} parent=1 // pred_region
      %s13 = ssub.s32 256, 256
      %14 = vsyncadd [#allocation3], %s13
      %s15 = sshll.u32 [#allocation2], 4
      %s16 = int_to_ptr.vmem [resolvable:$true] %s15
      %21 = dma.hbm_to_vmem [thread:$0]  %s0, 256, %s16, [#allocation3], 128, 128, 8
    $region5: #{tpu_custom_call.1} parent=1 // pred_fallthru
      _
    // Predicated region
    $region6: #{tpu_custom_call.1} parent=1 // pred_check
      _
    $region7: #{tpu_custom_call.1} parent=1 // pred_check_branch
      %23 = sbr.rel (0) target = $region9
    $region8: #{tpu_custom_call.1} parent=1 // pred_region
      _
    $region9: #{tpu_custom_call.1} parent=1 // pred_fallthru
      _
    // Predicated region
    $region10: #{tpu_custom_call.1} parent=1 // pred_check
      _
    $region11: #{tpu_custom_call.1} parent=1 // pred_check_branch
      %25 = sbr.rel (0) target = $region13
    $region12: #{tpu_custom_call.1} parent=1 // pred_region
      _
    $region13: #{tpu_custom_call.1} parent=1 // pred_fallthru
      _
    // Predicated region
    $region14: #{tpu_custom_call.1} parent=1 // pred_check
      _
    $region15: #{tpu_custom_call.1} parent=1 // pred_check_branch
      %27 = sbr.rel (0) target = $region17
    $region16: #{tpu_custom_call.1} parent=1 // pred_region
      %28 = dma.done [#allocation3], 256
    $region17: #{tpu_custom_call.1} parent=1 // pred_fallthru
      _
    %v29 = vld [vmem:[#allocation2] sm:$0xff]
    %v30 = vld [vmem:[#allocation2 + $0x8] sm:$0xff]
    %vm31 = vcmask 261120
    %v32 = vsel %vm31, %v29, 0.0
    %33 = vadd.xlane.f32.xlu0 %v32
    %v34 = vpop.xlane.xlu0 %33
    %v35 = vsel %vm31, %v30, 0.0
    %36 = vadd.xlane.f32.xlu0 %v35
    %v37 = vpop.xlane.xlu0 %36
    %v38 = vrcp.pop 32.0
    %v39 = vmul.f32 %v34, %v38
    %v40 = vmul.f32 %v37, %v38
    %v41 = vsub.f32 %v29, %v39
    %v42 = vsub.f32 %v30, %v40
    %v43 = vmul.f32 %v41, %v41
    %v44 = vmul.f32 %v42, %v42
    %v45 = vsel %vm31, %v43, 0.0
    %46 = vadd.xlane.f32.xlu0 %v45
    %v47 = vpop.xlane.xlu0 %46
    %v48 = vsel %vm31, %v44, 0.0
    %49 = vadd.xlane.f32.xlu0 %v48
    %v50 = vpop.xlane.xlu0 %49
    %v51 = vmul.f32 %v47, 0.032258064
    %v52 = vmul.f32 %v50, 0.032258064
    %v53 = vrsqrt.pop %v51
    %v54 = vmul.f32 %v51, %v53
    %vm55 = vcmp.eq.f32.partialorder %v51, inf
    %v56 = vsel %vm55, %v51, %v54
    %vm57 = vcmp.eq.f32.partialorder %v51, 0.0
    %v58 = vand.u32 %v51, 2147483648
    %v59 = vsel %vm57, %v58, %v56
    %v60 = vrsqrt.pop %v52
    %v61 = vmul.f32 %v52, %v60
    %vm62 = vcmp.eq.f32.partialorder %v52, inf
    %v63 = vsel %vm62, %v52, %v61
    %vm64 = vcmp.eq.f32.partialorder %v52, 0.0
    %v65 = vand.u32 %v52, 2147483648
    %v66 = vsel %vm64, %v65, %v63
    %v67 = vadd.f32 %v59, 1e-06
    %v68 = vadd.f32 %v66, 1e-06
    %v69 = vrcp.pop %v67
    %v70 = vrcp.pop %v68
    %v71 = vld [vmem:[%s1] sm:$0x1]
    %v72 = vld [vmem:[%s2] sm:$0x1]
    %v73 = vmul.f32 %v41, %v69
    %v74 = vmul.f32 %v42, %v70
    %v76 = vlaneseq
    %v77 = vshrl.u32 %v76, 7
    %v78 = vsub.s32 0, %v77
    %v79 = vrot.slane %v71, %v78
    %v81 = vmul.f32 %v73, %v79
    %v82 = vmul.f32 %v74, %v79
    %v84 = vlaneseq
    %v85 = vshrl.u32 %v84, 7
    %v86 = vsub.s32 0, %v85
    %v87 = vrot.slane %v72, %v86
    %v89 = vadd.f32 %v81, %v87
    %v90 = vadd.f32 %v82, %v87
    %91 = vst.msk [vmem:[#allocation5] sm:$0xff] %vm31, %v89
    %92 = vst.msk [vmem:[#allocation5 + $0x8] sm:$0xff] %vm31, %v90
    // Predicated region
    $region18: #{tpu_custom_call.1} parent=1 // pred_check
      _
    $region19: #{tpu_custom_call.1} parent=1 // pred_check_branch
      %94 = sbr.rel (0) target = $region21
    $region20: #{tpu_custom_call.1} parent=1 // pred_region
      %s96 = ssub.s32 256, 256
      %97 = vsyncadd [#allocation4], %s96
      %s98 = sshll.u32 [#allocation5], 4
      %s99 = int_to_ptr.vmem [resolvable:$true] %s98
      %104 = dma.vmem_to_hbm [thread:$0]  %s99, 256, %s3, [#allocation4], 128, 128, 8
    $region21: #{tpu_custom_call.1} parent=1 // pred_fallthru
      _
    // Predicated region
    $region22: #{tpu_custom_call.1} parent=1 // pred_check
      _
    $region23: #{tpu_custom_call.1} parent=1 // pred_check_branch
      %106 = sbr.rel (0) target = $region25
    $region24: #{tpu_custom_call.1} parent=1 // pred_region
      %107 = dma.done [#allocation4], 256
    $region25: #{tpu_custom_call.1} parent=1 // pred_fallthru
      _
    %108 = vsyncpa [#allocation3], 1
    %109 = vsyncpa [#allocation4], 1

</llo_original>
